<compile_context>
chip_gen: v6e
topology: v6e:2x2x1
jax: 0.10.0
libtpu: 0.0.40
codegen_flags: <defaults>
</compile_context>

<pallas_src>
import functools

import jax
import jax.numpy as jnp
from jax import lax
from jax.experimental import pallas as pl
from jax.experimental.pallas import tpu as pltpu

_VALID_STRATEGIES = ("none", "random", "weighted_random", "entropy_min", "entropy_max")

_MASK23 = 0x7FFFFF            # low 23 bits of the hash -> uniform int in [0, 2^23)
_U23_SCALE = float(1 << 23)


def _i32(x):
    """Python int -> signed 32-bit value (same bit pattern)."""
    x &= 0xFFFFFFFF
    return x - (1 << 32) if x >= (1 << 31) else x


_GOLD = _i32(0x9E3779B1)      # golden-ratio odd constant (Weyl increment)
_C1 = _i32(0x85EBCA6B)        # murmur3 fmix32 constants
_C2 = _i32(0xC2B2AE35)


def _lsr(h, s):
    """Logical right shift for int32 (arithmetic shift + mask off sign bits)."""
    return (h >> s) & jnp.int32((1 << (32 - s)) - 1)


def _uniform23(seed_s, row0, shape, num_cols):
    """23-bit uniform ints keyed by (seed, global element index).

    Tiling-invariant: the same (seed, row, col) always yields the same bits,
    regardless of block_rows / grid shape.
    """
    row = lax.broadcasted_iota(jnp.int32, shape, 0) + row0
    col = lax.broadcasted_iota(jnp.int32, shape, 1)
    idx = row * jnp.int32(num_cols) + col
    h = idx * jnp.int32(_GOLD) + seed_s * jnp.int32(_C2)
    # murmur3 fmix32 finalizer
    h = h ^ _lsr(h, 16)
    h = h * jnp.int32(_C1)
    h = h ^ _lsr(h, 13)
    h = h * jnp.int32(_C2)
    h = h ^ _lsr(h, 16)
    return h & jnp.int32(_MASK23)


# ----------------------------- kernels ------------------------------------ #

def _random_kernel(thresh_i, num_cols, seed_ref, o_ref):
    """strategy == 'random': mask = (rand > prob_missing). No weights DMA."""
    tb, m = o_ref.shape
    row0 = pl.program_id(0) * tb
    u = _uniform23(seed_ref[0], row0, (tb, m), num_cols)
    o_ref[...] = (u >= jnp.int32(thresh_i)).astype(jnp.float32)


def _weighted_random_kernel(prob_missing, num_cols, seed_ref, w_ref, o_ref):
    """strategy == 'weighted_random': mask = bernoulli(1 - p * w)."""
    w = w_ref[...]
    tb, m = w.shape
    row0 = pl.program_id(0) * tb
    u = _uniform23(seed_ref[0], row0, (tb, m), num_cols).astype(jnp.float32)
    thresh = (1.0 - prob_missing * w) * _U23_SCALE
    o_ref[...] = (u < thresh).astype(jnp.float32)


def _entropy_kernel(sign, tau, num_cols, seed_ref, w_ref, o_ref):
    """strategy in ('entropy_min', 'entropy_max')."""
    w = w_ref[...]
    tb, m = w.shape
    row0 = pl.program_id(0) * tb
    col = lax.broadcasted_iota(jnp.int32, (tb, m), 1)

    # Row entropy (XLU reduce over the un-padded modality axis).
    entropy = -jnp.sum(w * jnp.log(w + 1e-8), axis=-1, keepdims=True)      # (tb, 1)
    z = sign * (entropy - tau) / tau
    keep_prob = 1.0 / (1.0 + jnp.exp(-z))                                  # EUP, per row
    thresh = keep_prob * _U23_SCALE                                        # (tb, 1)

    u = _uniform23(seed_ref[0], row0, (tb, m), num_cols).astype(jnp.float32)
    mask = (u < thresh).astype(jnp.float32)                                # bernoulli

    # Guarantee >= 1 kept modality per row: one-hot at the first argmax(w).
    row_sum = jnp.sum(mask, axis=-1, keepdims=True)
    row_max = jnp.max(w, axis=-1, keepdims=True)
    first_max = jnp.min(jnp.where(w == row_max, col, jnp.int32(m)),
                        axis=-1, keepdims=True)
    onehot = (col == first_max).astype(jnp.float32)
    o_ref[...] = jnp.where(row_sum == 0.0, onehot, mask)


# ----------------------------- wrapper ------------------------------------ #

def _round_up(x, k):
    return ((x + k - 1) // k) * k


def _pick_block_rows(bp8, cap=512):
    """Largest multiple-of-8 divisor of bp8 that is <= cap and keeps grid >= 2."""
    if bp8 <= 8:
        return bp8
    best = 8
    d = 8
    limit = min(cap, bp8 // 2)          # grid >= 2 so both v7x TCs get work
    while d <= limit:
        if bp8 % d == 0:
            best = d
        d += 8
    return best


def curriculum_mask(weights, seed, *, strategy="none", prob_missing=0.0, tau=0.3,
                    training=True, max_block_rows=512):
    """JAX/Pallas equivalent of CurriculumMasker.forward.

    weights: [B, M] float gating weights.  seed: python int / int32 scalar.
    Returns a float32 binary mask [B, M].  RNG bit streams differ from torch
    but the distributional semantics match (23-bit uniform quantization).
    """
    if strategy not in _VALID_STRATEGIES:
        raise ValueError(f"Invalid strategy: {strategy}. Valid: {set(_VALID_STRATEGIES)}")

    weights = jnp.asarray(weights, jnp.float32)
    b, m = weights.shape

    # Same fast path as the PyTorch module (no RNG / kernel launch at all).
    if (not training) or strategy == "none":
        return jnp.ones_like(weights)

    bp = _round_up(b, 8)                       # only the sublane-multiple pad; M un-padded
    block_rows = _pick_block_rows(bp, max_block_rows)
    grid = bp // block_rows

    seed_arr = jnp.asarray([seed], dtype=jnp.int32)
    out_shape = jax.ShapeDtypeStruct((bp, m), jnp.float32)
    out_spec = pl.BlockSpec((block_rows, m), lambda i, s: (i, 0))
    cparams = pltpu.CompilerParams(dimension_semantics=("parallel",))

    if strategy == "random":
        # No weights DMA at all for this strategy.
        thresh_i = int(round(float(prob_missing) * (1 << 23)))
        out = pl.pallas_call(
            functools.partial(_random_kernel, thresh_i, m),
            out_shape=out_shape,
            grid_spec=pltpu.PrefetchScalarGridSpec(
                num_scalar_prefetch=1, grid=(grid,),
                in_specs=[], out_specs=out_spec),
            compiler_params=cparams,
            cost_estimate=pl.CostEstimate(
                flops=12 * bp * m, transcendentals=0, bytes_accessed=4 * bp * m),
        )(seed_arr)
    else:
        wp = weights if bp == b else jnp.pad(weights, ((0, bp - b), (0, 0)))
        in_spec = pl.BlockSpec((block_rows, m), lambda i, s: (i, 0))
        if strategy == "weighted_random":
            kernel = functools.partial(_weighted_random_kernel, float(prob_missing), m)
            transcendentals = 0
        else:
            sign = -1.0 if strategy == "entropy_min" else 1.0
            kernel = functools.partial(_entropy_kernel, sign, float(tau), m)
            transcendentals = bp * m + bp      # log per element + exp per row
        out = pl.pallas_call(
            kernel,
            out_shape=out_shape,
            grid_spec=pltpu.PrefetchScalarGridSpec(
                num_scalar_prefetch=1, grid=(grid,),
                in_specs=[in_spec], out_specs=out_spec),
            compiler_params=cparams,
            cost_estimate=pl.CostEstimate(
                flops=24 * bp * m, transcendentals=transcendentals,
                bytes_accessed=2 * 4 * bp * m),
        )(seed_arr, wp)

    return out if bp == b else out[:b, :]


if __name__ == "__main__":
    key = jax.random.PRNGKey(0)
    batch, num_modalities = 8, 4

    logits = jax.random.normal(key, (batch, num_modalities), dtype=jnp.float32)
    weights = jax.nn.softmax(logits, axis=-1)            # gating weights, rows sum to 1

    ok = True

    # training + entropy_min: binary mask, at least one modality kept per row.
    m1 = jax.block_until_ready(curriculum_mask(
        weights, 42, strategy="entropy_min", prob_missing=0.5, tau=0.3, training=True))
    ok &= (m1.shape == weights.shape)
    ok &= bool(jnp.all((m1 == 0.0) | (m1 == 1.0)))
    ok &= bool(jnp.all(jnp.sum(m1, axis=-1) >= 1.0))

    # training + entropy_max: same structural guarantees.
    m2 = jax.block_until_ready(curriculum_mask(
        weights, 11, strategy="entropy_max", prob_missing=0.5, tau=0.3, training=True))
    ok &= bool(jnp.all((m2 == 0.0) | (m2 == 1.0)))
    ok &= bool(jnp.all(jnp.sum(m2, axis=-1) >= 1.0))

    # training + weighted_random / random: binary masks of the right shape.
    m3 = jax.block_until_ready(curriculum_mask(
        weights, 7, strategy="weighted_random", prob_missing=0.3, training=True))
    ok &= (m3.shape == weights.shape) and bool(jnp.all((m3 == 0.0) | (m3 == 1.0)))

    m4 = jax.block_until_ready(curriculum_mask(
        weights, 3, strategy="random", prob_missing=0.3, training=True))
    ok &= bool(jnp.all((m4 == 0.0) | (m4 == 1.0)))

    # eval (or strategy='none'): all-ones mask, matching the PyTorch fast path.
    m5 = jax.block_until_ready(curriculum_mask(
        weights, 0, strategy="entropy_min", prob_missing=0.5, training=False))
    ok &= bool(jnp.all(m5 == 1.0))

    # Larger batch: exercises multi-tile grid (512-row tiles, grid=2) and sanity
    # checks the hash-PRNG keep rate (~= 1 - prob_missing for 'random').
    big_w = jax.nn.softmax(
        jax.random.normal(jax.random.PRNGKey(1), (1024, num_modalities), jnp.float32), -1)
    mr = jax.block_until_ready(curriculum_mask(
        big_w, 123, strategy="random", prob_missing=0.3, training=True))
    keep_rate = float(jnp.mean(mr))
    ok &= (mr.shape == big_w.shape) and (0.6 < keep_rate < 0.8)

    me = jax.block_until_ready(curriculum_mask(
        big_w, 9, strategy="entropy_max", prob_missing=0.5, tau=0.3, training=True))
    ok &= bool(jnp.all((me == 0.0) | (me == 1.0)))
    ok &= bool(jnp.all(jnp.sum(me, axis=-1) >= 1.0))

    if not ok:
        raise SystemExit("CurriculumMasker Pallas kernel sanity checks failed")
    print("KERNEL_OK")
</pallas_src>

<mosaic_0001>
module attributes {stable_mosaic.version = 11 : i64} {
  func.func @_entropy_kernel(%arg0: i32, %arg1: memref<1xi32, #tpu.memory_space<smem>>, %arg2: memref<8x4xf32, #tpu.memory_space<vmem>>, %arg3: memref<8x4xf32, #tpu.memory_space<vmem>>) attributes {dimension_semantics = [#tpu.dimension_semantics<parallel>], iteration_bounds = array<i64: 1>, scalar_prefetch = 1 : i64, scratch_operands = 0 : i64, tpu.core_type = #tpu.core_type<tc>, window_params = [{transform_indices = @transform_0, window_bounds = array<i64: 8, 4>}, {transform_indices = @transform_1, window_bounds = array<i64: 8, 4>}]} {
    %c0 = arith.constant 0 : index
    %c0_0 = arith.constant 0 : index
    %0 = vector.load %arg2[%c0, %c0_0] : memref<8x4xf32, #tpu.memory_space<vmem>>, vector<8x4xf32>
    %c8_i32 = arith.constant 8 : i32
    %1 = arith.muli %arg0, %c8_i32 : i32
    %2 = tpu.iota {dimensions = array<i32: 1>} : vector<8x4xi32>
    %cst = arith.constant 9.99999993E-9 : f32
    %3 = vector.broadcast %cst : f32 to vector<8x4xf32>
    %4 = arith.addf %0, %3 : vector<8x4xf32>
    %5 = math.log %4 : vector<8x4xf32>
    %6 = arith.mulf %0, %5 : vector<8x4xf32>
    %cst_1 = arith.constant dense<0.000000e+00> : vector<8xf32>
    %7 = vector.multi_reduction <add>, %6, %cst_1 [1] : vector<8x4xf32> to vector<8xf32>
    %8 = vector.shape_cast %7 : vector<8xf32> to vector<8x1xf32>
    %cst_2 = arith.constant 0.000000e+00 : f32
    %9 = vector.broadcast %cst_2 : f32 to vector<8x1xf32>
    %10 = arith.subf %9, %8 : vector<8x1xf32>
    %cst_3 = arith.constant 3.000000e-01 : f32
    %11 = vector.broadcast %cst_3 : f32 to vector<8x1xf32>
    %12 = arith.subf %10, %11 : vector<8x1xf32>
    %cst_4 = arith.constant -1.000000e+00 : f32
    %13 = vector.broadcast %cst_4 : f32 to vector<8x1xf32>
    %14 = arith.mulf %13, %12 : vector<8x1xf32>
    %cst_5 = arith.constant 3.000000e-01 : f32
    %15 = vector.broadcast %cst_5 : f32 to vector<8x1xf32>
    %16 = arith.divf %14, %15 : vector<8x1xf32>
    %cst_6 = arith.constant 0.000000e+00 : f32
    %17 = vector.broadcast %cst_6 : f32 to vector<8x1xf32>
    %18 = arith.subf %17, %16 : vector<8x1xf32>
    %19 = math.exp %18 : vector<8x1xf32>
    %cst_7 = arith.constant 1.000000e+00 : f32
    %20 = vector.broadcast %cst_7 : f32 to vector<8x1xf32>
    %21 = arith.addf %20, %19 : vector<8x1xf32>
    %cst_8 = arith.constant 1.000000e+00 : f32
    %22 = vector.broadcast %cst_8 : f32 to vector<8x1xf32>
    %23 = arith.divf %22, %21 : vector<8x1xf32>
    %cst_9 = arith.constant 0x4B000000 : f32
    %24 = vector.broadcast %cst_9 : f32 to vector<8x1xf32>
    %25 = arith.mulf %23, %24 : vector<8x1xf32>
    %c0_10 = arith.constant 0 : index
    %26 = memref.load %arg1[%c0_10] : memref<1xi32, #tpu.memory_space<smem>>
    %27 = tpu.iota {dimensions = array<i32: 0>} : vector<8x4xi32>
    %28 = vector.broadcast %1 : i32 to vector<8x4xi32>
    %29 = arith.addi %27, %28 : vector<8x4xi32>
    %30 = tpu.iota {dimensions = array<i32: 1>} : vector<8x4xi32>
    %c4_i32 = arith.constant 4 : i32
    %31 = vector.broadcast %c4_i32 : i32 to vector<8x4xi32>
    %32 = arith.muli %29, %31 : vector<8x4xi32>
    %33 = arith.addi %32, %30 : vector<8x4xi32>
    %c-1640531535_i32 = arith.constant -1640531535 : i32
    %34 = vector.broadcast %c-1640531535_i32 : i32 to vector<8x4xi32>
    %35 = arith.muli %33, %34 : vector<8x4xi32>
    %c-1028477387_i32 = arith.constant -1028477387 : i32
    %36 = arith.muli %26, %c-1028477387_i32 : i32
    %37 = vector.broadcast %36 : i32 to vector<8x4xi32>
    %38 = arith.addi %35, %37 : vector<8x4xi32>
    %c16_i32 = arith.constant 16 : i32
    %39 = vector.broadcast %c16_i32 : i32 to vector<8x4xi32>
    %40 = arith.shrsi %38, %39 : vector<8x4xi32>
    %c65535_i32 = arith.constant 65535 : i32
    %41 = vector.broadcast %c65535_i32 : i32 to vector<8x4xi32>
    %42 = arith.andi %40, %41 : vector<8x4xi32>
    %43 = arith.xori %38, %42 : vector<8x4xi32>
    %c-2048144789_i32 = arith.constant -2048144789 : i32
    %44 = vector.broadcast %c-2048144789_i32 : i32 to vector<8x4xi32>
    %45 = arith.muli %43, %44 : vector<8x4xi32>
    %c13_i32 = arith.constant 13 : i32
    %46 = vector.broadcast %c13_i32 : i32 to vector<8x4xi32>
    %47 = arith.shrsi %45, %46 : vector<8x4xi32>
    %c524287_i32 = arith.constant 524287 : i32
    %48 = vector.broadcast %c524287_i32 : i32 to vector<8x4xi32>
    %49 = arith.andi %47, %48 : vector<8x4xi32>
    %50 = arith.xori %45, %49 : vector<8x4xi32>
    %c-1028477387_i32_11 = arith.constant -1028477387 : i32
    %51 = vector.broadcast %c-1028477387_i32_11 : i32 to vector<8x4xi32>
    %52 = arith.muli %50, %51 : vector<8x4xi32>
    %c16_i32_12 = arith.constant 16 : i32
    %53 = vector.broadcast %c16_i32_12 : i32 to vector<8x4xi32>
    %54 = arith.shrsi %52, %53 : vector<8x4xi32>
    %c65535_i32_13 = arith.constant 65535 : i32
    %55 = vector.broadcast %c65535_i32_13 : i32 to vector<8x4xi32>
    %56 = arith.andi %54, %55 : vector<8x4xi32>
    %57 = arith.xori %52, %56 : vector<8x4xi32>
    %c8388607_i32 = arith.constant 8388607 : i32
    %58 = vector.broadcast %c8388607_i32 : i32 to vector<8x4xi32>
    %59 = arith.andi %57, %58 : vector<8x4xi32>
    %60 = arith.sitofp %59 : vector<8x4xi32> to vector<8x4xf32>
    %61 = vector.broadcast %25 : vector<8x1xf32> to vector<8x4xf32>
    %62 = arith.cmpf olt, %60, %61 : vector<8x4xf32>
    %63 = arith.extui %62 : vector<8x4xi1> to vector<8x4xi32>
    %64 = arith.sitofp %63 : vector<8x4xi32> to vector<8x4xf32>
    %cst_14 = arith.constant dense<0.000000e+00> : vector<8xf32>
    %65 = vector.multi_reduction <add>, %64, %cst_14 [1] : vector<8x4xf32> to vector<8xf32>
    %66 = vector.shape_cast %65 : vector<8xf32> to vector<8x1xf32>
    %cst_15 = arith.constant dense<0xFF800000> : vector<8xf32>
    %67 = vector.multi_reduction <maximumf>, %0, %cst_15 [1] : vector<8x4xf32> to vector<8xf32>
    %68 = vector.shape_cast %67 : vector<8xf32> to vector<8x1xf32>
    %69 = vector.broadcast %68 : vector<8x1xf32> to vector<8x4xf32>
    %70 = arith.cmpf oeq, %0, %69 : vector<8x4xf32>
    %c4_i32_16 = arith.constant 4 : i32
    %71 = vector.broadcast %c4_i32_16 : i32 to vector<8x4xi32>
    %72 = arith.select %70, %2, %71 : vector<8x4xi1>, vector<8x4xi32>
    %cst_17 = arith.constant dense<2147483647> : vector<8xi32>
    %73 = vector.multi_reduction <minsi>, %72, %cst_17 [1] : vector<8x4xi32> to vector<8xi32>
    %74 = vector.shape_cast %73 : vector<8xi32> to vector<8x1xi32>
    %75 = vector.broadcast %74 : vector<8x1xi32> to vector<8x4xi32>
    %76 = arith.cmpi eq, %2, %75 : vector<8x4xi32>
    %77 = arith.extui %76 : vector<8x4xi1> to vector<8x4xi32>
    %78 = arith.sitofp %77 : vector<8x4xi32> to vector<8x4xf32>
    %cst_18 = arith.constant 0.000000e+00 : f32
    %79 = vector.broadcast %cst_18 : f32 to vector<8x1xf32>
    %80 = arith.cmpf oeq, %66, %79 : vector<8x1xf32>
    %81 = vector.shape_cast %80 : vector<8x1xi1> to vector<8x1xi1>
    %82 = vector.broadcast %81 : vector<8x1xi1> to vector<8x4xi1>
    %83 = arith.select %82, %78, %64 : vector<8x4xi1>, vector<8x4xf32>
    %c0_19 = arith.constant 0 : index
    %c0_20 = arith.constant 0 : index
    %84 = vector.load %arg3[%c0_19, %c0_20] : memref<8x4xf32, #tpu.memory_space<vmem>>, vector<8x4xf32>
    tpu.vector_store %arg3[%c0_19, %c0_20], %83 {strides = array<i32>} : memref<8x4xf32, #tpu.memory_space<vmem>>, vector<8x4xf32>,
    return
  }
  func.func @transform_0(%arg0: i32, %arg1: memref<1xi32, #tpu.memory_space<smem>>) -> (i32, i32) {
    %c0_i32 = arith.constant 0 : i32
    %c0_i32_0 = arith.constant 0 : i32
    return %arg0, %c0_i32 : i32, i32
  }
  func.func @transform_1(%arg0: i32, %arg1: memref<1xi32, #tpu.memory_space<smem>>) -> (i32, i32) {
    %c0_i32 = arith.constant 0 : i32
    %c0_i32_0 = arith.constant 0 : i32
    return %arg0, %c0_i32 : i32, i32
  }
}

</mosaic_0001>

<llo_original>
// kernel: tpu_custom_call.1
$region0: #{tpu_custom_call.1}
  #allocation0 [shape = 'u32[]', space=smem, size = 0x4, offset = 0x4, fixed_abs, tag = 'smem constant byte address 0x4 - core index']
  #allocation1 [shape = 'u32[144,128]{1,0:T(1,128)}', space=vmem, size = 0x12000, scoped, tag = 'internal scratch']
  #allocation2 [shape = 's32[1]{0}', space=sflag, size = 0x4, scoped, tag = 'scoped memory for tpu_custom_call.1']
  #allocation3 [shape = 's32[1]{0:T(128)S(6)}', space=smem, size = 0x200, scoped, tag = 'prefetched SMEM operand 0']
  %s0 = inlined_call_operand.<no memory space> [shape: s32[1], index: 0, kind: input, shape index: {}]
  %s1 = inlined_call_operand.vmem [shape: f32[8,4], index: 1, kind: input, shape index: {}]
  %s2 = inlined_call_operand.vmem [shape: f32[8,4], index: 2, kind: output, shape index: {}]
  %s3 = sld [smem:[#allocation0]]
  $region14: #{tpu_custom_call.1} parent=0
    _
  %s5 = ssub.s32 1, %s3
  %s6 = scalar_select 0, %s5, %s3
  %7 = sst [smem:[#allocation3]] %s0
  // Predicated region
  $region2: #{tpu_custom_call.1} parent=0 // pred_check
    _
  $region3: #{tpu_custom_call.1} parent=0 // pred_check_branch
    %9 = sbr.rel (0) target = $region5
  $region4: #{tpu_custom_call.1} parent=0 // pred_region
    _
  $region5: #{tpu_custom_call.1} parent=0 // pred_fallthru
    _
  %v10 = vld [vmem:[%s1] sm:$0xff]
  %s11 = smul.u32 0, 8
  %v12 = vlaneseq
  %v13 = vand.u32 %v12, 127
  %v14 = vadd.f32 %v10, 1e-08
  %v15 = vlog2.pop %v14
  %v16 = vmul.f32 %v15, 0.6931472
  %v17 = vmul.f32 %v10, %v16
  %vm18 = vcmask 31744
  %v19 = vsel %vm18, %v17, 0.0
  %20 = vadd.xlane.f32.xlu0 %v19
  %v21 = vpop.xlane.xlu0 %20
  %v22 = vsub.f32 0.0, %v21
  %v23 = vsub.f32 %v22, 0.3
  %v24 = vmul.f32 %v23, -1.0
  %v25 = vrcp.pop 0.3
  %v26 = vmul.f32 %v24, %v25
  %v27 = vsub.f32 0.0, %v26
  %v28 = vmul.f32 %v27, 1.442695
  %v29 = vpow.pop %v28
  %v30 = vadd.f32 %v29, 1.0
  %v31 = vrcp.pop %v30
  %v32 = vmul.f32 1.0, %v31
  %v33 = vmul.f32 %v32, 8388608.0
  %s34 = sld [smem:[#allocation3]]
  %v35 = vlaneseq
  %v36 = vshrl.u32 %v35, 7
  %v37 = vstv %s11
  %v38 = vadd.s32 %v36, %v37
  %v39 = vmul.u32 %v38, 4
  %v40 = vadd.s32 %v39, %v13
  %v41 = vmul.u32 %v40, 2654435761
  %s42 = smul.u32 %s34, 3266489909
  %v43 = vstv %s42
  %v44 = vadd.s32 %v41, %v43
  %v45 = vshra.s32 %v44, 16
  %v46 = vand.u32 %v45, 65535
  %v47 = vxor.u32 %v44, %v46
  %v48 = vmul.u32 %v47, 2246822507
  %v49 = vshra.s32 %v48, 13
  %v50 = vand.u32 %v49, 524287
  %v51 = vxor.u32 %v48, %v50
  %v52 = vmul.u32 %v51, 3266489909
  %v53 = vshra.s32 %v52, 16
  %v54 = vand.u32 %v53, 65535
  %v55 = vxor.u32 %v52, %v54
  %v56 = vand.u32 %v55, 8388607
  %v57 = vcvt.s32.f32 %v56
  %vm58 = vcmp.lt.f32.partialorder %v57, %v33
  %v59 = vsel %vm58, 1, 0
  %v60 = vcvt.s32.f32 %v59
  %v61 = vsel %vm18, %v60, 0.0
  %62 = vadd.xlane.f32.xlu0 %v61
  %v63 = vpop.xlane.xlu0 %62
  %v64 = vsel %vm18, %v10, -inf
  %65 = vmax.xlane.f32.xlu0 %v64
  %v66 = vpop.xlane.xlu0 %65
  %vm67 = vcmp.eq.f32.partialorder %v10, %v66
  %v68 = vsel %vm67, %v13, 4
  %v69 = vsel %vm18, %v68, 2147483647
  %v70 = vand.u32 %v69, 65535
  %v71 = vshra.s32 %v69, 16
  %v72 = vcvt.s32.f32 %v70
  %v73 = vcvt.s32.f32 %v71
  %74 = vmin.xlane.f32.xlu0 %v73
  %v75 = vpop.xlane.xlu0 %74
  %vm76 = vcmp.eq.f32.partialorder %v73, %v75
  %v77 = vsel %vm76, %v72, inf
  %78 = vmin.xlane.f32.xlu0 %v77
  %v79 = vpop.xlane.xlu0 %78
  %v80 = vcvt.f32.s32 %v79
  %v81 = vcvt.f32.s32 %v75
  %v82 = vshll.u32 %v81, 16
  %v83 = vadd.s32 %v82, %v80
  %vm84 = vcmp.eq.s32.totalorder %v13, %v83
  %v85 = vsel %vm84, 1, 0
  %v86 = vcvt.s32.f32 %v85
  %vm87 = vcmp.eq.f32.partialorder %v63, 0.0
  %v88 = vsel %vm87, 1, 0
  %vm89 = vcmp.eq.s32.totalorder %v88, 1
  %v90 = vsel %vm89, %v86, %v60
  %91 = vst.msk [vmem:[%s2] sm:$0xff] %vm18, %v90
  // Predicated region
  $region6: #{tpu_custom_call.1} parent=0 // pred_check
    _
  $region7: #{tpu_custom_call.1} parent=0 // pred_check_branch
    %93 = sbr.rel (0) target = $region9
  $region8: #{tpu_custom_call.1} parent=0 // pred_region
    _
  $region9: #{tpu_custom_call.1} parent=0 // pred_fallthru
    _
  // Predicated region
  $region10: #{tpu_custom_call.1} parent=0 // pred_check
    _
  $region11: #{tpu_custom_call.1} parent=0 // pred_check_branch
    %95 = sbr.rel (0) target = $region13
  $region12: #{tpu_custom_call.1} parent=0 // pred_region
    _
  $region13: #{tpu_custom_call.1} parent=0 // pred_fallthru
    _

</llo_original>
